<compile_context>
chip_gen: v7x
topology: tpu7x:2x2x1
jax: 0.10.0
libtpu: 0.0.40
codegen_flags: <defaults>
</compile_context>

<pallas_src>
import functools
import math

import jax
import jax.numpy as jnp
from jax.experimental import pallas as pl
from jax.experimental.pallas import tpu as pltpu


# ---------------------------------------------------------------------------
# Fused  (x @ w + b) -> activation -> [training-mode batch-norm]  kernel
# ---------------------------------------------------------------------------
def _fused_linear_kernel(x_ref, w_ref, b_ref, g_ref, beta_ref, o_ref, *,
                         act, batch_norm, eps):
    acc = jnp.dot(x_ref[...], w_ref[...], preferred_element_type=jnp.float32)
    acc = acc + b_ref[...].astype(jnp.float32)            # (1, N) broadcast
    if act == "relu":
        acc = jnp.maximum(acc, 0.0)
    elif act == "leaky_relu":
        acc = jnp.where(acc >= 0.0, acc, 0.1 * acc)
    elif act == "sigmoid":
        acc = 1.0 / (1.0 + jnp.exp(-acc))
    if batch_norm:
        # Training-mode batch norm over the row (batch * spatial) dimension.
        # Valid because the whole M dimension lives in this single block.
        mean = jnp.mean(acc, axis=0, keepdims=True)
        var = jnp.mean(jnp.square(acc), axis=0, keepdims=True) - jnp.square(mean)
        inv = jax.lax.rsqrt(var + eps)
        acc = (acc - mean) * inv * g_ref[...].astype(jnp.float32) \
              + beta_ref[...].astype(jnp.float32)
    o_ref[...] = acc.astype(o_ref.dtype)


def fused_linear(x, w, b, gamma=None, beta=None, *, act="none",
                 batch_norm=False, eps=1e-5):
    """act(x @ w + b), optionally followed by training-mode batch-norm.

    x: (M, K), w: (K, N), b / gamma / beta: (N,).  Single full-array block —
    at the shapes this model uses, the largest operand is ~4.2 MiB, well
    inside VMEM, so one maximal block is the right tile (per perf review).
    """
    M, K = x.shape
    Kw, N = w.shape
    assert K == Kw, (K, Kw)
    if gamma is None:
        gamma = jnp.ones((N,), jnp.float32)
    if beta is None:
        beta = jnp.zeros((N,), jnp.float32)
    kernel = functools.partial(_fused_linear_kernel, act=act,
                               batch_norm=batch_norm, eps=eps)
    return pl.pallas_call(
        kernel,
        out_shape=jax.ShapeDtypeStruct((M, N), x.dtype),
        grid=(1,),
        in_specs=[
            pl.BlockSpec((M, K), lambda i: (0, 0)),
            pl.BlockSpec((K, N), lambda i: (0, 0)),
            pl.BlockSpec((1, N), lambda i: (0, 0)),
            pl.BlockSpec((1, N), lambda i: (0, 0)),
            pl.BlockSpec((1, N), lambda i: (0, 0)),
        ],
        out_specs=pl.BlockSpec((M, N), lambda i: (0, 0)),
        compiler_params=pltpu.CompilerParams(
            dimension_semantics=("arbitrary",),
            vmem_limit_bytes=32 * 1024 * 1024,   # safe on v5e/v6e/v7x
        ),
    )(x, w, b.reshape(1, N), gamma.reshape(1, N), beta.reshape(1, N))


# ---------------------------------------------------------------------------
# Conv / ConvTranspose via im2col (layout in JAX) + fused Pallas matmul
# ---------------------------------------------------------------------------
def _extract_patches_nhwc(x, *, k, stride, pad):
    """(B,H,W,C) -> (B,Ho,Wo,k*k*C), patches flattened in (kh, kw, c) order.

    Pure data-layout (im2col); the matmul itself runs in the Pallas kernel.
    """
    B, H, W, C = x.shape
    if pad:
        x = jnp.pad(x, ((0, 0), (pad, pad), (pad, pad), (0, 0)))
    Ho = (H + 2 * pad - k) // stride + 1
    Wo = (W + 2 * pad - k) // stride + 1
    cols = []
    for kh in range(k):
        for kw in range(k):
            cols.append(x[:, kh:kh + stride * (Ho - 1) + 1:stride,
                           kw:kw + stride * (Wo - 1) + 1:stride, :])
    return jnp.concatenate(cols, axis=-1)


def conv2d_fused(x_nchw, w, b, gamma=None, beta=None, *, act,
                 batch_norm=False, k=4, stride=2, pad=1):
    """nn.Conv2d(cin, cout, 4, 2, 1) + activation [+ BatchNorm2d].
    w is in torch layout (cout, cin, k, k)."""
    B, Cin, H, W = x_nchw.shape
    Cout = w.shape[0]
    x = jnp.transpose(x_nchw, (0, 2, 3, 1))                       # NHWC
    patches = _extract_patches_nhwc(x, k=k, stride=stride, pad=pad)
    Ho, Wo = patches.shape[1], patches.shape[2]
    w_flat = jnp.transpose(w, (2, 3, 1, 0)).reshape(k * k * Cin, Cout)
    y = fused_linear(patches.reshape(B * Ho * Wo, k * k * Cin), w_flat, b,
                     gamma, beta, act=act, batch_norm=batch_norm)
    return jnp.transpose(y.reshape(B, Ho, Wo, Cout), (0, 3, 1, 2))


def conv_transpose2d_fused(x_nchw, w_t, b, gamma=None, beta=None, *, act,
                           batch_norm=False, k=4, stride=2, pad=1):
    """nn.ConvTranspose2d(cin, cout, 4, 2, 1) + activation [+ BatchNorm2d].

    Expressed as zero-insertion upsampling + stride-1 convolution with the
    spatially-flipped, in/out-swapped kernel; matmul runs in the fused
    Pallas kernel.  w_t is in torch layout (cin, cout, k, k).
    """
    B, Cin, H, W = x_nchw.shape
    Cout = w_t.shape[1]
    x = jnp.transpose(x_nchw, (0, 2, 3, 1))                       # NHWC
    Hd, Wd = (H - 1) * stride + 1, (W - 1) * stride + 1
    xd = jnp.zeros((B, Hd, Wd, Cin), x.dtype).at[:, ::stride, ::stride, :].set(x)
    eff_pad = k - 1 - pad
    patches = _extract_patches_nhwc(xd, k=k, stride=1, pad=eff_pad)
    Ho, Wo = patches.shape[1], patches.shape[2]                   # == stride*H
    w_eq = jnp.transpose(w_t[:, :, ::-1, ::-1], (2, 3, 0, 1)).reshape(
        k * k * Cin, Cout)
    y = fused_linear(patches.reshape(B * Ho * Wo, k * k * Cin), w_eq, b,
                     gamma, beta, act=act, batch_norm=batch_norm)
    return jnp.transpose(y.reshape(B, Ho, Wo, Cout), (0, 3, 1, 2))


# ---------------------------------------------------------------------------
# Generator: parameter construction + forward (conv=True path)
# ---------------------------------------------------------------------------
def _uniform(key, shape, bound):
    return jax.random.uniform(key, shape, jnp.float32, -bound, bound)


def init_generator_params(key, width, noise_dim, s_chan, a_chan, folds=0):
    if not folds:
        folds = int(math.log(width / 8) / math.log(8))
    assert folds in (1, 2, 3), "unsupported folds"
    enc_width = width // (2 ** folds)

    enc_ch = {1: [(s_chan, 16)],
              2: [(s_chan, 8), (8, 16)],
              3: [(s_chan, 8), (8, 16), (16, 16)]}[folds]
    dec_ch = {1: [(16, a_chan)],
              2: [(16, 8), (8, a_chan)],
              3: [(16, 8), (8, 8), (8, a_chan)]}[folds]

    keys = iter(jax.random.split(key, 4 * (len(enc_ch) + len(dec_ch)) + 8))

    def conv_w(cin, cout):                      # torch Conv2d layout
        bound = 1.0 / math.sqrt(cin * 16)
        return (_uniform(next(keys), (cout, cin, 4, 4), bound),
                _uniform(next(keys), (cout,), bound))

    def convT_w(cin, cout):                     # torch ConvTranspose2d layout
        bound = 1.0 / math.sqrt(cin * 16)
        return (_uniform(next(keys), (cin, cout, 4, 4), bound),
                _uniform(next(keys), (cout,), bound))

    def linear_w(fin, fout):
        bound = 1.0 / math.sqrt(fin)
        return (_uniform(next(keys), (fin, fout), bound),
                _uniform(next(keys), (fout,), bound))

    def bn(c):
        return jnp.ones((c,), jnp.float32), jnp.zeros((c,), jnp.float32)

    flat = 16 * enc_width ** 2
    return {
        "folds": folds,
        "enc_width": enc_width,
        "enc_conv": [conv_w(ci, co) for ci, co in enc_ch],
        "enc_bn": bn(16),
        "lin1": linear_w(noise_dim + flat, 1024),
        "bn1": bn(1024),
        "lin2": linear_w(1024, flat),
        "bn2": bn(flat),
        "dec_conv": [convT_w(ci, co) for ci, co in dec_ch],
        "dec_bn": [bn(co) for _, co in dec_ch[:-1]],
    }


def generator_forward(params, scenes, noise, *, conv=True):
    """Matches Generator.forward(scenes, noise) for the conv=True branch."""
    B = scenes.shape[0]
    if not conv:
        # TODO(synk): conv=False `lin_model` branch not instantiated here.
        raise NotImplementedError("only the conv=True path is implemented")

    # encoder: Conv2d + LeakyReLU per fold, BatchNorm2d(16) on the last output
    h = scenes
    n_enc = len(params["enc_conv"])
    for i, (w, b) in enumerate(params["enc_conv"]):
        last = i == n_enc - 1
        g, bb = params["enc_bn"] if last else (None, None)
        h = conv2d_fused(h, w, b, g, bb, act="leaky_relu", batch_norm=last)

    # flat_features = scene_features.view(B, -1): metadata-only reshape.
    flat_features = h.reshape(B, -1)
    x = jnp.concatenate([flat_features, noise], axis=1)

    # conv_model: Linear+ReLU+BN1d, Linear+ReLU+BN1d, View, deconv stack
    w1, b1 = params["lin1"]; g1, be1 = params["bn1"]
    x = fused_linear(x, w1, b1, g1, be1, act="relu", batch_norm=True)
    w2, b2 = params["lin2"]; g2, be2 = params["bn2"]
    x = fused_linear(x, w2, b2, g2, be2, act="relu", batch_norm=True)

    ew = params["enc_width"]
    x = x.reshape(B, 16, ew, ew)   # View((-1, 16, ew, ew)) — zero-copy reshape

    n_dec = len(params["dec_conv"])
    for i, (w, b) in enumerate(params["dec_conv"]):
        if i == n_dec - 1:
            x = conv_transpose2d_fused(x, w, b, act="sigmoid", batch_norm=False)
        else:
            g, bb = params["dec_bn"][i]
            x = conv_transpose2d_fused(x, w, b, g, bb, act="leaky_relu",
                                       batch_norm=True)
    return x


if __name__ == "__main__":
    key = jax.random.PRNGKey(0)
    k_par, k_scn, k_noi, k_tx, k_tw = jax.random.split(key, 5)

    # Small config consistent with the module: width=16, folds=1 ->
    # encoder downsamples 16x16 -> 8x8, decoder upsamples back to 16x16.
    width, noise_dim, s_chan, a_chan, folds, batch = 16, 8, 4, 4, 1, 2

    params = init_generator_params(k_par, width, noise_dim, s_chan, a_chan, folds)
    scenes = jax.random.normal(k_scn, (batch, s_chan, width, width), jnp.float32)
    noise = jax.random.normal(k_noi, (batch, noise_dim), jnp.float32)

    # Sanity-check the fused Pallas kernel against a plain-JAX reference.
    xt = jax.random.normal(k_tx, (8, 256), jnp.float32)
    wt = jax.random.normal(k_tw, (256, 128), jnp.float32) * 0.05
    bt = jnp.full((128,), 0.1, jnp.float32)
    got = fused_linear(xt, wt, bt, act="relu")
    ref = jnp.maximum(xt @ wt + bt, 0.0)
    assert jnp.allclose(got, ref, rtol=1e-2, atol=1e-2), float(
        jnp.max(jnp.abs(got - ref)))

    out = jax.block_until_ready(generator_forward(params, scenes, noise))

    assert out.shape == (batch, a_chan, width, width), out.shape
    assert out.dtype == jnp.float32
    assert bool(jnp.all(jnp.isfinite(out)))
    assert bool(jnp.all((out >= 0.0) & (out <= 1.0)))   # Sigmoid output range
    print("KERNEL_OK")
</pallas_src>

<mosaic_0001>
module attributes {stable_mosaic.version = 11 : i64} {
  func.func @_fused_linear_kernel(%arg0: i32, %arg1: memref<8x256xf32, #tpu.memory_space<vmem>>, %arg2: memref<256x128xf32, #tpu.memory_space<vmem>>, %arg3: memref<1x128xf32, #tpu.memory_space<vmem>>, %arg4: memref<1x128xf32, #tpu.memory_space<vmem>>, %arg5: memref<1x128xf32, #tpu.memory_space<vmem>>, %arg6: memref<8x128xf32, #tpu.memory_space<vmem>>) attributes {dimension_semantics = [#tpu.dimension_semantics<arbitrary>], iteration_bounds = array<i64: 1>, scalar_prefetch = 0 : i64, scratch_operands = 0 : i64, tpu.core_type = #tpu.core_type<tc>, window_params = [{pipeline_mode = #tpu.pipeline_mode<synchronous>, transform_indices = @transform_0, window_bounds = array<i64: 8, 256>}, {pipeline_mode = #tpu.pipeline_mode<synchronous>, transform_indices = @transform_1, window_bounds = array<i64: 256, 128>}, {pipeline_mode = #tpu.pipeline_mode<synchronous>, transform_indices = @transform_2, window_bounds = array<i64: 1, 128>}, {pipeline_mode = #tpu.pipeline_mode<synchronous>, transform_indices = @transform_3, window_bounds = array<i64: 1, 128>}, {pipeline_mode = #tpu.pipeline_mode<synchronous>, transform_indices = @transform_4, window_bounds = array<i64: 1, 128>}, {pipeline_mode = #tpu.pipeline_mode<synchronous>, transform_indices = @transform_5, window_bounds = array<i64: 8, 128>}]} {
    %c0 = arith.constant 0 : index
    %c0_0 = arith.constant 0 : index
    %0 = vector.load %arg1[%c0, %c0_0] : memref<8x256xf32, #tpu.memory_space<vmem>>, vector<8x256xf32>
    %c0_1 = arith.constant 0 : index
    %c0_2 = arith.constant 0 : index
    %1 = vector.load %arg2[%c0_1, %c0_2] : memref<256x128xf32, #tpu.memory_space<vmem>>, vector<256x128xf32>
    %cst = arith.constant dense<0.000000e+00> : vector<8x128xf32>
    %2 = tpu.matmul %0, %1, %cst {dimension_numbers = #tpu.dot_dimension_numbers<[1], [0], [0], [1], [0, 0, 1, 1], [], []>} : vector<8x256xf32>, vector<256x128xf32>, vector<8x128xf32> -> vector<8x128xf32>
    %c0_3 = arith.constant 0 : index
    %c0_4 = arith.constant 0 : index
    %3 = vector.load %arg3[%c0_3, %c0_4] : memref<1x128xf32, #tpu.memory_space<vmem>>, vector<1x128xf32>
    %4 = vector.broadcast %3 : vector<1x128xf32> to vector<8x128xf32>
    %5 = arith.addf %2, %4 : vector<8x128xf32>
    %cst_5 = arith.constant 0.000000e+00 : f32
    %6 = vector.broadcast %cst_5 : f32 to vector<8x128xf32>
    %7 = arith.maximumf %5, %6 : vector<8x128xf32>
    %c0_6 = arith.constant 0 : index
    %c0_7 = arith.constant 0 : index
    %8 = vector.load %arg6[%c0_6, %c0_7] : memref<8x128xf32, #tpu.memory_space<vmem>>, vector<8x128xf32>
    tpu.vector_store %arg6[%c0_6, %c0_7], %7 {strides = array<i32>} : memref<8x128xf32, #tpu.memory_space<vmem>>, vector<8x128xf32>,
    return
  }
  func.func @transform_0(%arg0: i32) -> (i32, i32) {
    %c0_i32 = arith.constant 0 : i32
    %c0_i32_0 = arith.constant 0 : i32
    %c0_i32_1 = arith.constant 0 : i32
    return %c0_i32, %c0_i32_0 : i32, i32
  }
  func.func @transform_1(%arg0: i32) -> (i32, i32) {
    %c0_i32 = arith.constant 0 : i32
    %c0_i32_0 = arith.constant 0 : i32
    %c0_i32_1 = arith.constant 0 : i32
    return %c0_i32, %c0_i32_0 : i32, i32
  }
  func.func @transform_2(%arg0: i32) -> (i32, i32) {
    %c0_i32 = arith.constant 0 : i32
    %c0_i32_0 = arith.constant 0 : i32
    %c0_i32_1 = arith.constant 0 : i32
    return %c0_i32, %c0_i32_0 : i32, i32
  }
  func.func @transform_3(%arg0: i32) -> (i32, i32) {
    %c0_i32 = arith.constant 0 : i32
    %c0_i32_0 = arith.constant 0 : i32
    %c0_i32_1 = arith.constant 0 : i32
    return %c0_i32, %c0_i32_0 : i32, i32
  }
  func.func @transform_4(%arg0: i32) -> (i32, i32) {
    %c0_i32 = arith.constant 0 : i32
    %c0_i32_0 = arith.constant 0 : i32
    %c0_i32_1 = arith.constant 0 : i32
    return %c0_i32, %c0_i32_0 : i32, i32
  }
  func.func @transform_5(%arg0: i32) -> (i32, i32) {
    %c0_i32 = arith.constant 0 : i32
    %c0_i32_0 = arith.constant 0 : i32
    %c0_i32_1 = arith.constant 0 : i32
    return %c0_i32, %c0_i32_0 : i32, i32
  }
}

</mosaic_0001>

<llo_original>
// kernel: tpu_custom_call.1
$region0: #{tpu_custom_call.1}
  #allocation0 [shape = 'u32[]', space=smem, size = 0x4, offset = 0x4, fixed_abs, tag = 'smem constant byte address 0x4 - core index']
  #allocation1 [shape = 'u32[144,128]{1,0:T(1,128)}', space=vmem, size = 0x12000, scoped, tag = 'internal scratch']
  %s0 = inlined_call_operand.hbm [shape: f32[8,256], index: 0, kind: input, shape index: {}]
  %s1 = inlined_call_operand.hbm [shape: f32[256,128], index: 1, kind: input, shape index: {}]
  %s2 = inlined_call_operand.vmem [shape: f32[1,128], index: 2, kind: input, shape index: {}]
  %s3 = inlined_call_operand.vmem [shape: f32[1,128], index: 3, kind: input, shape index: {}]
  %s4 = inlined_call_operand.vmem [shape: f32[1,128], index: 4, kind: input, shape index: {}]
  %s5 = inlined_call_operand.hbm [shape: f32[8,128], index: 5, kind: output, shape index: {}]
  %s6 = sld [smem:[#allocation0]]
  $region38: #{tpu_custom_call.1} parent=0
    _
  %s8 = ssub.s32 1, %s6
  %s9 = scalar_select 0, %s8, %s6
  $region1: #{tpu_custom_call.1} parent=0
    #allocation2 [shape = 'u8[8192]{0}', space=vmem, size = 0x2000, scoped, tag = 'input window, operand 0, single buffered']
    #allocation3 [shape = 's32[1]{0}', space=sflag, size = 0x4, scoped, tag = 'scoped memory for tpu_custom_call.1']
    #allocation4 [shape = 's32[1]{0}', space=sflag, size = 0x4, scoped, tag = 'scoped memory for tpu_custom_call.1']
    #allocation5 [shape = 'u8[131072]{0}', space=vmem, size = 0x20000, scoped, tag = 'input window, operand 1, single buffered']
    #allocation6 [shape = 's32[1]{0}', space=sflag, size = 0x4, scoped, tag = 'scoped memory for tpu_custom_call.1']
    #allocation7 [shape = 'u8[4096]{0}', space=vmem, size = 0x1000, scoped, tag = 'output window, operand 0, single buffered']
    %10 = vsyncpa [#allocation3], 0
    %11 = vsyncpa [#allocation6], 0
    %12 = vsyncpa [#allocation4], 0
    // Predicated region
    $region2: #{tpu_custom_call.1} parent=1 // pred_check
      _
    $region3: #{tpu_custom_call.1} parent=1 // pred_check_branch
      %14 = sbr.rel (0) target = $region5
    $region4: #{tpu_custom_call.1} parent=1 // pred_region
      %s16 = ssub.s32 256, 256
      %17 = vsyncadd [#allocation3], %s16
      %s19 = sshll.u32 [#allocation2], 4
      %s20 = int_to_ptr.vmem [resolvable:$true] %s19
      %22 = dma.hbm_to_vmem [thread:$0]  %s0, 256, %s20, [#allocation3]
    $region5: #{tpu_custom_call.1} parent=1 // pred_fallthru
      _
    // Predicated region
    $region6: #{tpu_custom_call.1} parent=1 // pred_check
      _
    $region7: #{tpu_custom_call.1} parent=1 // pred_check_branch
      %24 = sbr.rel (0) target = $region9
    $region8: #{tpu_custom_call.1} parent=1 // pred_region
      %s26 = ssub.s32 4096, 4096
      %27 = vsyncadd [#allocation6], %s26
      %s28 = sshll.u32 [#allocation5], 4
      %s29 = int_to_ptr.vmem [resolvable:$true] %s28
      %34 = dma.hbm_to_vmem [thread:$0]  %s1, 4096, %s29, [#allocation6], 128, 128, 8
    $region9: #{tpu_custom_call.1} parent=1 // pred_fallthru
      _
    // Predicated region
    $region10: #{tpu_custom_call.1} parent=1 // pred_check
      _
    $region11: #{tpu_custom_call.1} parent=1 // pred_check_branch
      %36 = sbr.rel (0) target = $region13
    $region12: #{tpu_custom_call.1} parent=1 // pred_region
      _
    $region13: #{tpu_custom_call.1} parent=1 // pred_fallthru
      _
    // Predicated region
    $region14: #{tpu_custom_call.1} parent=1 // pred_check
      _
    $region15: #{tpu_custom_call.1} parent=1 // pred_check_branch
      %38 = sbr.rel (0) target = $region17
    $region16: #{tpu_custom_call.1} parent=1 // pred_region
      _
    $region17: #{tpu_custom_call.1} parent=1 // pred_fallthru
      _
    // Predicated region
    $region18: #{tpu_custom_call.1} parent=1 // pred_check
      _
    $region19: #{tpu_custom_call.1} parent=1 // pred_check_branch
      %40 = sbr.rel (0) target = $region21
    $region20: #{tpu_custom_call.1} parent=1 // pred_region
      _
    $region21: #{tpu_custom_call.1} parent=1 // pred_fallthru
      _
    // Predicated region
    $region22: #{tpu_custom_call.1} parent=1 // pred_check
      _
    $region23: #{tpu_custom_call.1} parent=1 // pred_check_branch
      %42 = sbr.rel (0) target = $region25
    $region24: #{tpu_custom_call.1} parent=1 // pred_region
      %43 = dma.done [#allocation3], 256
    $region25: #{tpu_custom_call.1} parent=1 // pred_fallthru
      _
    // Predicated region
    $region26: #{tpu_custom_call.1} parent=1 // pred_check
      _
    $region27: #{tpu_custom_call.1} parent=1 // pred_check_branch
      %45 = sbr.rel (0) target = $region29
    $region28: #{tpu_custom_call.1} parent=1 // pred_region
      %46 = dma.done [#allocation6], 4096
    $region29: #{tpu_custom_call.1} parent=1 // pred_fallthru
      _
    %v47 = vld [vmem:[#allocation2] sm:$0xff]
    %v48 = vld [vmem:[#allocation2 + $0x8] sm:$0xff]
    %v49 = vld [vmem:[#allocation5] sm:$0xff]
    %v50 = vld [vmem:[#allocation5 + $0x8] sm:$0xff]
    %v51 = vld [vmem:[#allocation5 + $0x10] sm:$0xff]
    %v52 = vld [vmem:[#allocation5 + $0x18] sm:$0xff]
    %v53 = vld [vmem:[#allocation5 + $0x20] sm:$0xff]
    %v54 = vld [vmem:[#allocation5 + $0x28] sm:$0xff]
    %v55 = vld [vmem:[#allocation5 + $0x30] sm:$0xff]
    %v56 = vld [vmem:[#allocation5 + $0x38] sm:$0xff]
    %v57 = vld [vmem:[#allocation5 + $0x40] sm:$0xff]
    %v58 = vld [vmem:[#allocation5 + $0x48] sm:$0xff]
    %v59 = vld [vmem:[#allocation5 + $0x50] sm:$0xff]
    %v60 = vld [vmem:[#allocation5 + $0x58] sm:$0xff]
    %v61 = vld [vmem:[#allocation5 + $0x60] sm:$0xff]
    %v62 = vld [vmem:[#allocation5 + $0x68] sm:$0xff]
    %v63 = vld [vmem:[#allocation5 + $0x70] sm:$0xff]
    %v64 = vld [vmem:[#allocation5 + $0x78] sm:$0xff]
    %v65 = vld [vmem:[#allocation5 + $0x80] sm:$0xff]
    %v66 = vld [vmem:[#allocation5 + $0x88] sm:$0xff]
    %v67 = vld [vmem:[#allocation5 + $0x90] sm:$0xff]
    %v68 = vld [vmem:[#allocation5 + $0x98] sm:$0xff]
    %v69 = vld [vmem:[#allocation5 + $0xa0] sm:$0xff]
    %v70 = vld [vmem:[#allocation5 + $0xa8] sm:$0xff]
    %v71 = vld [vmem:[#allocation5 + $0xb0] sm:$0xff]
    %v72 = vld [vmem:[#allocation5 + $0xb8] sm:$0xff]
    %v73 = vld [vmem:[#allocation5 + $0xc0] sm:$0xff]
    %v74 = vld [vmem:[#allocation5 + $0xc8] sm:$0xff]
    %v75 = vld [vmem:[#allocation5 + $0xd0] sm:$0xff]
    %v76 = vld [vmem:[#allocation5 + $0xd8] sm:$0xff]
    %v77 = vld [vmem:[#allocation5 + $0xe0] sm:$0xff]
    %v78 = vld [vmem:[#allocation5 + $0xe8] sm:$0xff]
    %v79 = vld [vmem:[#allocation5 + $0xf0] sm:$0xff]
    %v80 = vld [vmem:[#allocation5 + $0xf8] sm:$0xff]
    %v81 = vld [vmem:[%s2] sm:$0x1]
    %v83 = vlaneseq
    %v84 = vshrl.u32 %v83, 7
    %v85 = vsub.s32 0, %v84
    %v86 = vrot.slane %v81, %v85
    %88 = vmatprep.subr.mxu0 0.0
    %89 = vmatpush1.msra.mxu0 %v49
    %90 = vmatprep.subr.mxu0 0.0
    %91 = vmatpush1.msra.mxu0 %v50
    %92 = vmatprep.subr.mxu0 0.0
    %93 = vmatpush1.msra.mxu0 %v51
    %94 = vmatprep.subr.mxu0 0.0
    %95 = vmatpush1.msra.mxu0 %v52
    %96 = vmatprep.subr.mxu0 0.0
    %97 = vmatpush1.msra.mxu0 %v53
    %98 = vmatprep.subr.mxu0 0.0
    %99 = vmatpush1.msra.mxu0 %v54
    %100 = vmatprep.subr.mxu0 0.0
    %101 = vmatpush1.msra.mxu0 %v55
    %102 = vmatprep.subr.mxu0 0.0
    %103 = vmatpush1.msra.mxu0 %v56
    %104 = vmatprep.subr.mxu0 0.0
    %105 = vmatpush1.msra.mxu0 %v57
    %106 = vmatprep.subr.mxu0 0.0
    %107 = vmatpush1.msra.mxu0 %v58
    %108 = vmatprep.subr.mxu0 0.0
    %109 = vmatpush1.msra.mxu0 %v59
    %110 = vmatprep.subr.mxu0 0.0
    %111 = vmatpush1.msra.mxu0 %v60
    %112 = vmatprep.subr.mxu0 0.0
    %113 = vmatpush1.msra.mxu0 %v61
    %114 = vmatprep.subr.mxu0 0.0
    %115 = vmatpush1.msra.mxu0 %v62
    %116 = vmatprep.subr.mxu0 0.0
    %117 = vmatpush1.msra.mxu0 %v63
    %118 = vmatprep.subr.mxu0 0.0
    %119 = vmatpush1.msra.mxu0 %v64
    %120 = vmatprep.subr.mxu0 0.0
    %121 = vmatpush1.msra.mxu0 %v65
    %122 = vmatprep.subr.mxu0 0.0
    %123 = vmatpush1.msra.mxu0 %v66
    %124 = vmatprep.subr.mxu0 0.0
    %125 = vmatpush1.msra.mxu0 %v67
    %126 = vmatprep.subr.mxu0 0.0
    %127 = vmatpush1.msra.mxu0 %v68
    %128 = vmatprep.subr.mxu0 0.0
    %129 = vmatpush1.msra.mxu0 %v69
    %130 = vmatprep.subr.mxu0 0.0
    %131 = vmatpush1.msra.mxu0 %v70
    %132 = vmatprep.subr.mxu0 0.0
    %133 = vmatpush1.msra.mxu0 %v71
    %134 = vmatprep.subr.mxu0 0.0
    %135 = vmatpush1.msra.mxu0 %v72
    %136 = vmatprep.subr.mxu0 0.0
    %137 = vmatpush1.msra.mxu0 %v73
    %138 = vmatprep.subr.mxu0 0.0
    %139 = vmatpush1.msra.mxu0 %v74
    %140 = vmatprep.subr.mxu0 0.0
    %141 = vmatpush1.msra.mxu0 %v75
    %142 = vmatprep.subr.mxu0 0.0
    %143 = vmatpush1.msra.mxu0 %v76
    %144 = vmatprep.subr.mxu0 0.0
    %145 = vmatpush1.msra.mxu0 %v77
    %146 = vmatprep.subr.mxu0 0.0
    %147 = vmatpush1.msra.mxu0 %v78
    %148 = vmatprep.subr.mxu0 0.0
    %149 = vmatpush1.msra.mxu0 %v79
    %150 = vmatprep.subr.mxu0 0.0
    %151 = vmatpush1.msra.mxu0 %v80
    %152 = vmatprep.mubr.f32.mxu0 %v48
    %153 = vmatmul.mubr.f32.gmra.mrb[0].mxu0 %v47
    %v154 = vpop.f32.mrb[0].mxu0
    %v155 = vadd.f32 %v86, %v154
    %v156 = vpop.f32.mrb[0].mxu0
    %157 = vdwg.mxu0
    %v158 = vmax.f32 %v155, 0.0
    %159 = vst [vmem:[#allocation7] sm:$0xff] %v158
    // Predicated region
    $region30: #{tpu_custom_call.1} parent=1 // pred_check
      _
    $region31: #{tpu_custom_call.1} parent=1 // pred_check_branch
      %161 = sbr.rel (0) target = $region33
    $region32: #{tpu_custom_call.1} parent=1 // pred_region
      %s163 = ssub.s32 128, 128
      %164 = vsyncadd [#allocation4], %s163
      %s166 = sshll.u32 [#allocation7], 4
      %s167 = int_to_ptr.vmem [resolvable:$true] %s166
      %169 = dma.vmem_to_hbm [thread:$0]  %s167, 128, %s5, [#allocation4]
    $region33: #{tpu_custom_call.1} parent=1 // pred_fallthru
      _
    // Predicated region
    $region34: #{tpu_custom_call.1} parent=1 // pred_check
      _
    $region35: #{tpu_custom_call.1} parent=1 // pred_check_branch
      %171 = sbr.rel (0) target = $region37
    $region36: #{tpu_custom_call.1} parent=1 // pred_region
      %172 = dma.done [#allocation4], 128
    $region37: #{tpu_custom_call.1} parent=1 // pred_fallthru
      _
    %173 = vsyncpa [#allocation3], 1
    %174 = vsyncpa [#allocation6], 1
    %175 = vsyncpa [#allocation4], 1

</llo_original>
